<compile_context>
chip_gen: v5e
topology: v5e:2x2
jax: 0.10.0
libtpu: 0.0.40
codegen_flags: <defaults>
</compile_context>

<pallas_src>
from functools import partial

import jax
import jax.numpy as jnp
from jax.experimental import pallas as pl
from jax.experimental.pallas import tpu as pltpu


# ----------------------------------------------------------------------------
# Single fused kernel: LSTM recurrence over T steps + 3-layer MLP head.
# Weights arrive pre-transposed so every matmul is a plain [rows, K] @ [K, N].
# PyTorch LSTM gate order is (i, f, g, o).  x arrives as (T*B, I) in (t, b)
# row order, bf16.  Output is (T*B, O) f32 in (t, b) row order.
# ----------------------------------------------------------------------------
def fused_lstm_mlp_kernel(x_ref, wih_ref, whh_ref, b_ref,
                          w1_ref, b1_ref, w2_ref, b2_ref, w3_ref, b3_ref,
                          out_ref, hseq_ref, *, B, T):
    H = whh_ref.shape[0]

    # ---- hoisted input projection: one (T*B, I) @ (I, 4H) bf16 MXU matmul ----
    gx = (jnp.dot(x_ref[...], wih_ref[...],
                  preferred_element_type=jnp.float32)
          + b_ref[...])                                       # (T*B, 4H) f32

    whh = whh_ref[...]                                        # (H, 4H) bf16
    h_bf = jnp.zeros((B, H), jnp.bfloat16)                    # h fed to the MXU
    c = jnp.zeros((B, H), jnp.float32)                        # cell state (f32)

    # ---- sequential recurrence (static unroll; T is small & known) ----------
    for t in range(T):
        gates = (gx[t * B:(t + 1) * B, :]
                 + jnp.dot(h_bf, whh, preferred_element_type=jnp.float32))

        # Full-vreg nonlinearities on the 4H = 128-lane gates (f32), slice after.
        sig = jax.nn.sigmoid(gates)
        tng = jnp.tanh(gates)
        i_g = sig[:, 0 * H:1 * H]
        f_g = sig[:, 1 * H:2 * H]
        g_g = tng[:, 2 * H:3 * H]
        o_g = sig[:, 3 * H:4 * H]

        c = f_g * c + i_g * g_g
        h = o_g * jnp.tanh(c)                                 # f32
        h_bf = h.astype(jnp.bfloat16)                         # next-step MXU input
        hseq_ref[t * B:(t + 1) * B, :] = h_bf                 # one contiguous store

    # ---- fused MLP head: fc1 -> ReLU -> fc2 -> ReLU -> fc3 ------------------
    h_seq = hseq_ref[...]                                     # (T*B, H) bf16
    y = jnp.dot(h_seq, w1_ref[...],
                preferred_element_type=jnp.float32) + b1_ref[...]
    y = jnp.maximum(y, 0.0)
    y = jnp.dot(y.astype(jnp.bfloat16), w2_ref[...],
                preferred_element_type=jnp.float32) + b2_ref[...]
    y = jnp.maximum(y, 0.0)
    y = jnp.dot(y.astype(jnp.bfloat16), w3_ref[...],
                preferred_element_type=jnp.float32) + b3_ref[...]   # (T*B, O) f32

    # ---- single lane-dense output store --------------------------------------
    out_ref[...] = y


# ----------------------------------------------------------------------------
# Param preparation: done ONCE, outside jit (transposes / bias fusion / bf16).
# ----------------------------------------------------------------------------
def prepare_params(params):
    bf = jnp.bfloat16
    return (
        params["w_ih"].T.astype(bf),                                  # (I, 4H)
        params["w_hh"].T.astype(bf),                                  # (H, 4H)
        (params["b_ih"] + params["b_hh"]).reshape(1, -1)
            .astype(jnp.float32),                                     # (1, 4H)
        params["w1"].T.astype(bf), params["b1"].reshape(1, -1).astype(jnp.float32),
        params["w2"].T.astype(bf), params["b2"].reshape(1, -1).astype(jnp.float32),
        params["w3"].T.astype(bf), params["b3"].reshape(1, -1).astype(jnp.float32),
    )


# ----------------------------------------------------------------------------
# Jitted wrapper: essentially just the pallas_call.
# ----------------------------------------------------------------------------
@jax.jit
def lstm_model_forward(x, prepared):
    """x: (B, T, input_size) float32 -> (B, T, output_size) float32."""
    B, T, I = x.shape
    wih, whh, bias, w1, b1, w2, b2, w3, b3 = prepared
    H = whh.shape[0]
    O = w3.shape[1]

    # (t, b) row order so the kernel's per-step slice is contiguous.
    x_tb = jnp.transpose(x, (1, 0, 2)).reshape(T * B, I).astype(jnp.bfloat16)

    vmem = pl.BlockSpec(memory_space=pltpu.MemorySpace.VMEM)

    out_flat = pl.pallas_call(
        partial(fused_lstm_mlp_kernel, B=B, T=T),
        out_shape=jax.ShapeDtypeStruct((T * B, O), jnp.float32),
        in_specs=[vmem] * 10,
        out_specs=vmem,
        scratch_shapes=[pltpu.VMEM((T * B, H), jnp.bfloat16)],
    )(x_tb, wih, whh, bias, w1, b1, w2, b2, w3, b3)

    # (T*B, O) in (t, b) order -> (B, T, O); tiny reshape/transpose, off-kernel.
    return jnp.transpose(out_flat.reshape(T, B, O), (1, 0, 2))


# ----------------------------------------------------------------------------
# Pure-JAX f32 reference (correctness check only)
# ----------------------------------------------------------------------------
def reference_forward(x, params):
    B, T, I = x.shape
    H = params["w_hh"].shape[1]
    wih_t, whh_t = params["w_ih"].T, params["w_hh"].T
    bias = params["b_ih"] + params["b_hh"]

    def step(carry, x_t):
        h, c = carry
        g = x_t @ wih_t + h @ whh_t + bias
        i = jax.nn.sigmoid(g[:, 0 * H:1 * H])
        f = jax.nn.sigmoid(g[:, 1 * H:2 * H])
        gg = jnp.tanh(g[:, 2 * H:3 * H])
        o = jax.nn.sigmoid(g[:, 3 * H:4 * H])
        c = f * c + i * gg
        h = o * jnp.tanh(c)
        return (h, c), h

    h0 = jnp.zeros((B, H), jnp.float32)
    _, hs = jax.lax.scan(step, (h0, h0), jnp.transpose(x, (1, 0, 2)))
    h = jnp.transpose(hs, (1, 0, 2))                          # (B, T, H)
    y = jnp.maximum(h @ params["w1"].T + params["b1"], 0.0)
    y = jnp.maximum(y @ params["w2"].T + params["b2"], 0.0)
    return y @ params["w3"].T + params["b3"]


# ----------------------------------------------------------------------------
if __name__ == "__main__":
    B, T = 2, 8
    input_size, hidden_size, output_size = 16, 32, 8

    key = jax.random.PRNGKey(0)
    ks = jax.random.split(key, 11)

    def init(k, shape, scale=0.1):
        return (scale * jax.random.normal(k, shape)).astype(jnp.float32)

    params = {
        # nn.LSTM(input_size, hidden_size): gate order (i, f, g, o)
        "w_ih": init(ks[0], (4 * hidden_size, input_size)),
        "w_hh": init(ks[1], (4 * hidden_size, hidden_size)),
        "b_ih": init(ks[2], (4 * hidden_size,)),
        "b_hh": init(ks[3], (4 * hidden_size,)),
        # fc1: hidden -> 64, fc2: 64 -> 32, fc3: 32 -> output_size
        "w1": init(ks[4], (64, hidden_size)),
        "b1": init(ks[5], (64,)),
        "w2": init(ks[6], (32, 64)),
        "b2": init(ks[7], (32,)),
        "w3": init(ks[8], (output_size, 32)),
        "b3": init(ks[9], (output_size,)),
    }

    x = jax.random.normal(ks[10], (B, T, input_size), dtype=jnp.float32)

    prepared = prepare_params(params)          # one-time, outside jit

    out = lstm_model_forward(x, prepared)
    out = jax.block_until_ready(out)
    assert out.shape == (B, T, output_size), out.shape

    ref = reference_forward(x, params)
    # bf16 MXU operands (f32 accumulation) -> relaxed tolerance vs f32 reference.
    max_err = float(jnp.max(jnp.abs(out - ref)))
    assert jnp.allclose(out, ref, atol=5e-2, rtol=5e-2), max_err

    print("KERNEL_OK")
</pallas_src>

<mosaic_0001>
module attributes {stable_mosaic.version = 11 : i64} {
  func.func @fused_lstm_mlp_kernel(%arg0: memref<16x16xbf16, #tpu.memory_space<vmem>>, %arg1: memref<16x128xbf16, #tpu.memory_space<vmem>>, %arg2: memref<32x128xbf16, #tpu.memory_space<vmem>>, %arg3: memref<1x128xf32, #tpu.memory_space<vmem>>, %arg4: memref<32x64xbf16, #tpu.memory_space<vmem>>, %arg5: memref<1x64xf32, #tpu.memory_space<vmem>>, %arg6: memref<64x32xbf16, #tpu.memory_space<vmem>>, %arg7: memref<1x32xf32, #tpu.memory_space<vmem>>, %arg8: memref<32x8xbf16, #tpu.memory_space<vmem>>, %arg9: memref<1x8xf32, #tpu.memory_space<vmem>>, %arg10: memref<16x8xf32, #tpu.memory_space<vmem>>, %arg11: memref<16x32xbf16, #tpu.memory_space<vmem>>) attributes {dimension_semantics = [], scalar_prefetch = 0 : i64, scratch_operands = 1 : i64, tpu.core_type = #tpu.core_type<tc>} {
    %c0 = arith.constant 0 : index
    %c0_0 = arith.constant 0 : index
    %0 = vector.load %arg0[%c0, %c0_0] : memref<16x16xbf16, #tpu.memory_space<vmem>>, vector<16x16xbf16>
    %c0_1 = arith.constant 0 : index
    %c0_2 = arith.constant 0 : index
    %1 = vector.load %arg1[%c0_1, %c0_2] : memref<16x128xbf16, #tpu.memory_space<vmem>>, vector<16x128xbf16>
    %cst = arith.constant dense<0.000000e+00> : vector<16x128xf32>
    %2 = tpu.matmul %0, %1, %cst {dimension_numbers = #tpu.dot_dimension_numbers<[1], [0], [0], [1], [0, 0, 1, 1], [], []>} : vector<16x16xbf16>, vector<16x128xbf16>, vector<16x128xf32> -> vector<16x128xf32>
    %c0_3 = arith.constant 0 : index
    %c0_4 = arith.constant 0 : index
    %3 = vector.load %arg3[%c0_3, %c0_4] : memref<1x128xf32, #tpu.memory_space<vmem>>, vector<1x128xf32>
    %4 = vector.broadcast %3 : vector<1x128xf32> to vector<16x128xf32>
    %5 = arith.addf %2, %4 : vector<16x128xf32>
    %c0_5 = arith.constant 0 : index
    %c0_6 = arith.constant 0 : index
    %6 = vector.load %arg2[%c0_5, %c0_6] : memref<32x128xbf16, #tpu.memory_space<vmem>>, vector<32x128xbf16>
    %cst_7 = arith.constant 0.000000e+00 : bf16
    %7 = vector.broadcast %cst_7 : bf16 to vector<2x32xbf16>
    %cst_8 = arith.constant 0.000000e+00 : f32
    %8 = vector.broadcast %cst_8 : f32 to vector<2x32xf32>
    %9 = vector.extract_strided_slice %5 {offsets = [0, 0], sizes = [2, 128], strides = [1, 1]} : vector<16x128xf32> to vector<2x128xf32>
    %cst_9 = arith.constant dense<0.000000e+00> : vector<2x128xf32>
    %10 = tpu.matmul %7, %6, %cst_9 {dimension_numbers = #tpu.dot_dimension_numbers<[1], [0], [0], [1], [0, 0, 1, 1], [], []>} : vector<2x32xbf16>, vector<32x128xbf16>, vector<2x128xf32> -> vector<2x128xf32>
    %11 = arith.addf %9, %10 : vector<2x128xf32>
    %12 = arith.negf %11 : vector<2x128xf32>
    %13 = math.exp %12 : vector<2x128xf32>
    %cst_10 = arith.constant 1.000000e+00 : f32
    %14 = vector.broadcast %cst_10 : f32 to vector<2x128xf32>
    %15 = arith.addf %14, %13 : vector<2x128xf32>
    %16 = arith.divf %14, %15 : vector<2x128xf32>
    %17 = math.tanh %11 : vector<2x128xf32>
    %18 = vector.extract_strided_slice %16 {offsets = [0, 0], sizes = [2, 32], strides = [1, 1]} : vector<2x128xf32> to vector<2x32xf32>
    %19 = vector.extract_strided_slice %16 {offsets = [0, 32], sizes = [2, 32], strides = [1, 1]} : vector<2x128xf32> to vector<2x32xf32>
    %20 = vector.extract_strided_slice %17 {offsets = [0, 64], sizes = [2, 32], strides = [1, 1]} : vector<2x128xf32> to vector<2x32xf32>
    %21 = vector.extract_strided_slice %16 {offsets = [0, 96], sizes = [2, 32], strides = [1, 1]} : vector<2x128xf32> to vector<2x32xf32>
    %22 = arith.mulf %19, %8 : vector<2x32xf32>
    %23 = arith.mulf %18, %20 : vector<2x32xf32>
    %24 = arith.addf %22, %23 : vector<2x32xf32>
    %25 = math.tanh %24 : vector<2x32xf32>
    %26 = arith.mulf %21, %25 : vector<2x32xf32>
    %27 = arith.truncf %26 : vector<2x32xf32> to vector<2x32xbf16>
    %c0_11 = arith.constant 0 : index
    %c0_12 = arith.constant 0 : index
    %28 = vector.load %arg11[%c0_11, %c0_12] : memref<16x32xbf16, #tpu.memory_space<vmem>>, vector<2x32xbf16>
    tpu.vector_store %arg11[%c0_11, %c0_12], %27 {strides = array<i32>} : memref<16x32xbf16, #tpu.memory_space<vmem>>, vector<2x32xbf16>,
    %29 = vector.extract_strided_slice %5 {offsets = [2, 0], sizes = [2, 128], strides = [1, 1]} : vector<16x128xf32> to vector<2x128xf32>
    %cst_13 = arith.constant dense<0.000000e+00> : vector<2x128xf32>
    %30 = tpu.matmul %27, %6, %cst_13 {dimension_numbers = #tpu.dot_dimension_numbers<[1], [0], [0], [1], [0, 0, 1, 1], [], []>} : vector<2x32xbf16>, vector<32x128xbf16>, vector<2x128xf32> -> vector<2x128xf32>
    %31 = arith.addf %29, %30 : vector<2x128xf32>
    %32 = arith.negf %31 : vector<2x128xf32>
    %33 = math.exp %32 : vector<2x128xf32>
    %cst_14 = arith.constant 1.000000e+00 : f32
    %34 = vector.broadcast %cst_14 : f32 to vector<2x128xf32>
    %35 = arith.addf %34, %33 : vector<2x128xf32>
    %36 = arith.divf %34, %35 : vector<2x128xf32>
    %37 = math.tanh %31 : vector<2x128xf32>
    %38 = vector.extract_strided_slice %36 {offsets = [0, 0], sizes = [2, 32], strides = [1, 1]} : vector<2x128xf32> to vector<2x32xf32>
    %39 = vector.extract_strided_slice %36 {offsets = [0, 32], sizes = [2, 32], strides = [1, 1]} : vector<2x128xf32> to vector<2x32xf32>
    %40 = vector.extract_strided_slice %37 {offsets = [0, 64], sizes = [2, 32], strides = [1, 1]} : vector<2x128xf32> to vector<2x32xf32>
    %41 = vector.extract_strided_slice %36 {offsets = [0, 96], sizes = [2, 32], strides = [1, 1]} : vector<2x128xf32> to vector<2x32xf32>
    %42 = arith.mulf %39, %24 : vector<2x32xf32>
    %43 = arith.mulf %38, %40 : vector<2x32xf32>
    %44 = arith.addf %42, %43 : vector<2x32xf32>
    %45 = math.tanh %44 : vector<2x32xf32>
    %46 = arith.mulf %41, %45 : vector<2x32xf32>
    %47 = arith.truncf %46 : vector<2x32xf32> to vector<2x32xbf16>
    %c2 = arith.constant 2 : index
    %c0_15 = arith.constant 0 : index
    %48 = vector.load %arg11[%c2, %c0_15] : memref<16x32xbf16, #tpu.memory_space<vmem>>, vector<2x32xbf16>
    tpu.vector_store %arg11[%c2, %c0_15], %47 {strides = array<i32>} : memref<16x32xbf16, #tpu.memory_space<vmem>>, vector<2x32xbf16>,
    %49 = vector.extract_strided_slice %5 {offsets = [4, 0], sizes = [2, 128], strides = [1, 1]} : vector<16x128xf32> to vector<2x128xf32>
    %cst_16 = arith.constant dense<0.000000e+00> : vector<2x128xf32>
    %50 = tpu.matmul %47, %6, %cst_16 {dimension_numbers = #tpu.dot_dimension_numbers<[1], [0], [0], [1], [0, 0, 1, 1], [], []>} : vector<2x32xbf16>, vector<32x128xbf16>, vector<2x128xf32> -> vector<2x128xf32>
    %51 = arith.addf %49, %50 : vector<2x128xf32>
    %52 = arith.negf %51 : vector<2x128xf32>
    %53 = math.exp %52 : vector<2x128xf32>
    %cst_17 = arith.constant 1.000000e+00 : f32
    %54 = vector.broadcast %cst_17 : f32 to vector<2x128xf32>
    %55 = arith.addf %54, %53 : vector<2x128xf32>
    %56 = arith.divf %54, %55 : vector<2x128xf32>
    %57 = math.tanh %51 : vector<2x128xf32>
    %58 = vector.extract_strided_slice %56 {offsets = [0, 0], sizes = [2, 32], strides = [1, 1]} : vector<2x128xf32> to vector<2x32xf32>
    %59 = vector.extract_strided_slice %56 {offsets = [0, 32], sizes = [2, 32], strides = [1, 1]} : vector<2x128xf32> to vector<2x32xf32>
    %60 = vector.extract_strided_slice %57 {offsets = [0, 64], sizes = [2, 32], strides = [1, 1]} : vector<2x128xf32> to vector<2x32xf32>
    %61 = vector.extract_strided_slice %56 {offsets = [0, 96], sizes = [2, 32], strides = [1, 1]} : vector<2x128xf32> to vector<2x32xf32>
    %62 = arith.mulf %59, %44 : vector<2x32xf32>
    %63 = arith.mulf %58, %60 : vector<2x32xf32>
    %64 = arith.addf %62, %63 : vector<2x32xf32>
    %65 = math.tanh %64 : vector<2x32xf32>
    %66 = arith.mulf %61, %65 : vector<2x32xf32>
    %67 = arith.truncf %66 : vector<2x32xf32> to vector<2x32xbf16>
    %c4 = arith.constant 4 : index
    %c0_18 = arith.constant 0 : index
    %68 = vector.load %arg11[%c4, %c0_18] : memref<16x32xbf16, #tpu.memory_space<vmem>>, vector<2x32xbf16>
    tpu.vector_store %arg11[%c4, %c0_18], %67 {strides = array<i32>} : memref<16x32xbf16, #tpu.memory_space<vmem>>, vector<2x32xbf16>,
    %69 = vector.extract_strided_slice %5 {offsets = [6, 0], sizes = [2, 128], strides = [1, 1]} : vector<16x128xf32> to vector<2x128xf32>
    %cst_19 = arith.constant dense<0.000000e+00> : vector<2x128xf32>
    %70 = tpu.matmul %67, %6, %cst_19 {dimension_numbers = #tpu.dot_dimension_numbers<[1], [0], [0], [1], [0, 0, 1, 1], [], []>} : vector<2x32xbf16>, vector<32x128xbf16>, vector<2x128xf32> -> vector<2x128xf32>
    %71 = arith.addf %69, %70 : vector<2x128xf32>
    %72 = arith.negf %71 : vector<2x128xf32>
    %73 = math.exp %72 : vector<2x128xf32>
    %cst_20 = arith.constant 1.000000e+00 : f32
    %74 = vector.broadcast %cst_20 : f32 to vector<2x128xf32>
    %75 = arith.addf %74, %73 : vector<2x128xf32>
    %76 = arith.divf %74, %75 : vector<2x128xf32>
    %77 = math.tanh %71 : vector<2x128xf32>
    %78 = vector.extract_strided_slice %76 {offsets = [0, 0], sizes = [2, 32], strides = [1, 1]} : vector<2x128xf32> to vector<2x32xf32>
    %79 = vector.extract_strided_slice %76 {offsets = [0, 32], sizes = [2, 32], strides = [1, 1]} : vector<2x128xf32> to vector<2x32xf32>
    %80 = vector.extract_strided_slice %77 {offsets = [0, 64], sizes = [2, 32], strides = [1, 1]} : vector<2x128xf32> to vector<2x32xf32>
    %81 = vector.extract_strided_slice %76 {offsets = [0, 96], sizes = [2, 32], strides = [1, 1]} : vector<2x128xf32> to vector<2x32xf32>
    %82 = arith.mulf %79, %64 : vector<2x32xf32>
    %83 = arith.mulf %78, %80 : vector<2x32xf32>
    %84 = arith.addf %82, %83 : vector<2x32xf32>
    %85 = math.tanh %84 : vector<2x32xf32>
    %86 = arith.mulf %81, %85 : vector<2x32xf32>
    %87 = arith.truncf %86 : vector<2x32xf32> to vector<2x32xbf16>
    %c6 = arith.constant 6 : index
    %c0_21 = arith.constant 0 : index
    %88 = vector.load %arg11[%c6, %c0_21] : memref<16x32xbf16, #tpu.memory_space<vmem>>, vector<2x32xbf16>
    tpu.vector_store %arg11[%c6, %c0_21], %87 {strides = array<i32>} : memref<16x32xbf16, #tpu.memory_space<vmem>>, vector<2x32xbf16>,
    %89 = vector.extract_strided_slice %5 {offsets = [8, 0], sizes = [2, 128], strides = [1, 1]} : vector<16x128xf32> to vector<2x128xf32>
    %cst_22 = arith.constant dense<0.000000e+00> : vector<2x128xf32>
    %90 = tpu.matmul %87, %6, %cst_22 {dimension_numbers = #tpu.dot_dimension_numbers<[1], [0], [0], [1], [0, 0, 1, 1], [], []>} : vector<2x32xbf16>, vector<32x128xbf16>, vector<2x128xf32> -> vector<2x128xf32>
    %91 = arith.addf %89, %90 : vector<2x128xf32>
    %92 = arith.negf %91 : vector<2x128xf32>
    %93 = math.exp %92 : vector<2x128xf32>
    %cst_23 = arith.constant 1.000000e+00 : f32
    %94 = vector.broadcast %cst_23 : f32 to vector<2x128xf32>
    %95 = arith.addf %94, %93 : vector<2x128xf32>
    %96 = arith.divf %94, %95 : vector<2x128xf32>
    %97 = math.tanh %91 : vector<2x128xf32>
    %98 = vector.extract_strided_slice %96 {offsets = [0, 0], sizes = [2, 32], strides = [1, 1]} : vector<2x128xf32> to vector<2x32xf32>
    %99 = vector.extract_strided_slice %96 {offsets = [0, 32], sizes = [2, 32], strides = [1, 1]} : vector<2x128xf32> to vector<2x32xf32>
    %100 = vector.extract_strided_slice %97 {offsets = [0, 64], sizes = [2, 32], strides = [1, 1]} : vector<2x128xf32> to vector<2x32xf32>
    %101 = vector.extract_strided_slice %96 {offsets = [0, 96], sizes = [2, 32], strides = [1, 1]} : vector<2x128xf32> to vector<2x32xf32>
    %102 = arith.mulf %99, %84 : vector<2x32xf32>
    %103 = arith.mulf %98, %100 : vector<2x32xf32>
    %104 = arith.addf %102, %103 : vector<2x32xf32>
    %105 = math.tanh %104 : vector<2x32xf32>
    %106 = arith.mulf %101, %105 : vector<2x32xf32>
    %107 = arith.truncf %106 : vector<2x32xf32> to vector<2x32xbf16>
    %c8 = arith.constant 8 : index
    %c0_24 = arith.constant 0 : index
    %108 = vector.load %arg11[%c8, %c0_24] : memref<16x32xbf16, #tpu.memory_space<vmem>>, vector<2x32xbf16>
    tpu.vector_store %arg11[%c8, %c0_24], %107 {strides = array<i32>} : memref<16x32xbf16, #tpu.memory_space<vmem>>, vector<2x32xbf16>,
    %109 = vector.extract_strided_slice %5 {offsets = [10, 0], sizes = [2, 128], strides = [1, 1]} : vector<16x128xf32> to vector<2x128xf32>
    %cst_25 = arith.constant dense<0.000000e+00> : vector<2x128xf32>
    %110 = tpu.matmul %107, %6, %cst_25 {dimension_numbers = #tpu.dot_dimension_numbers<[1], [0], [0], [1], [0, 0, 1, 1], [], []>} : vector<2x32xbf16>, vector<32x128xbf16>, vector<2x128xf32> -> vector<2x128xf32>
    %111 = arith.addf %109, %110 : vector<2x128xf32>
    %112 = arith.negf %111 : vector<2x128xf32>
    %113 = math.exp %112 : vector<2x128xf32>
    %cst_26 = arith.constant 1.000000e+00 : f32
    %114 = vector.broadcast %cst_26 : f32 to vector<2x128xf32>
    %115 = arith.addf %114, %113 : vector<2x128xf32>
    %116 = arith.divf %114, %115 : vector<2x128xf32>
    %117 = math.tanh %111 : vector<2x128xf32>
    %118 = vector.extract_strided_slice %116 {offsets = [0, 0], sizes = [2, 32], strides = [1, 1]} : vector<2x128xf32> to vector<2x32xf32>
    %119 = vector.extract_strided_slice %116 {offsets = [0, 32], sizes = [2, 32], strides = [1, 1]} : vector<2x128xf32> to vector<2x32xf32>
    %120 = vector.extract_strided_slice %117 {offsets = [0, 64], sizes = [2, 32], strides = [1, 1]} : vector<2x128xf32> to vector<2x32xf32>
    %121 = vector.extract_strided_slice %116 {offsets = [0, 96], sizes = [2, 32], strides = [1, 1]} : vector<2x128xf32> to vector<2x32xf32>
    %122 = arith.mulf %119, %104 : vector<2x32xf32>
    %123 = arith.mulf %118, %120 : vector<2x32xf32>
    %124 = arith.addf %122, %123 : vector<2x32xf32>
    %125 = math.tanh %124 : vector<2x32xf32>
    %126 = arith.mulf %121, %125 : vector<2x32xf32>
    %127 = arith.truncf %126 : vector<2x32xf32> to vector<2x32xbf16>
    %c10 = arith.constant 10 : index
    %c0_27 = arith.constant 0 : index
    %128 = vector.load %arg11[%c10, %c0_27] : memref<16x32xbf16, #tpu.memory_space<vmem>>, vector<2x32xbf16>
    tpu.vector_store %arg11[%c10, %c0_27], %127 {strides = array<i32>} : memref<16x32xbf16, #tpu.memory_space<vmem>>, vector<2x32xbf16>,
    %129 = vector.extract_strided_slice %5 {offsets = [12, 0], sizes = [2, 128], strides = [1, 1]} : vector<16x128xf32> to vector<2x128xf32>
    %cst_28 = arith.constant dense<0.000000e+00> : vector<2x128xf32>
    %130 = tpu.matmul %127, %6, %cst_28 {dimension_numbers = #tpu.dot_dimension_numbers<[1], [0], [0], [1], [0, 0, 1, 1], [], []>} : vector<2x32xbf16>, vector<32x128xbf16>, vector<2x128xf32> -> vector<2x128xf32>
    %131 = arith.addf %129, %130 : vector<2x128xf32>
    %132 = arith.negf %131 : vector<2x128xf32>
    %133 = math.exp %132 : vector<2x128xf32>
    %cst_29 = arith.constant 1.000000e+00 : f32
    %134 = vector.broadcast %cst_29 : f32 to vector<2x128xf32>
    %135 = arith.addf %134, %133 : vector<2x128xf32>
    %136 = arith.divf %134, %135 : vector<2x128xf32>
    %137 = math.tanh %131 : vector<2x128xf32>
    %138 = vector.extract_strided_slice %136 {offsets = [0, 0], sizes = [2, 32], strides = [1, 1]} : vector<2x128xf32> to vector<2x32xf32>
    %139 = vector.extract_strided_slice %136 {offsets = [0, 32], sizes = [2, 32], strides = [1, 1]} : vector<2x128xf32> to vector<2x32xf32>
    %140 = vector.extract_strided_slice %137 {offsets = [0, 64], sizes = [2, 32], strides = [1, 1]} : vector<2x128xf32> to vector<2x32xf32>
    %141 = vector.extract_strided_slice %136 {offsets = [0, 96], sizes = [2, 32], strides = [1, 1]} : vector<2x128xf32> to vector<2x32xf32>
    %142 = arith.mulf %139, %124 : vector<2x32xf32>
    %143 = arith.mulf %138, %140 : vector<2x32xf32>
    %144 = arith.addf %142, %143 : vector<2x32xf32>
    %145 = math.tanh %144 : vector<2x32xf32>
    %146 = arith.mulf %141, %145 : vector<2x32xf32>
    %147 = arith.truncf %146 : vector<2x32xf32> to vector<2x32xbf16>
    %c12 = arith.constant 12 : index
    %c0_30 = arith.constant 0 : index
    %148 = vector.load %arg11[%c12, %c0_30] : memref<16x32xbf16, #tpu.memory_space<vmem>>, vector<2x32xbf16>
    tpu.vector_store %arg11[%c12, %c0_30], %147 {strides = array<i32>} : memref<16x32xbf16, #tpu.memory_space<vmem>>, vector<2x32xbf16>,
    %149 = vector.extract_strided_slice %5 {offsets = [14, 0], sizes = [2, 128], strides = [1, 1]} : vector<16x128xf32> to vector<2x128xf32>
    %cst_31 = arith.constant dense<0.000000e+00> : vector<2x128xf32>
    %150 = tpu.matmul %147, %6, %cst_31 {dimension_numbers = #tpu.dot_dimension_numbers<[1], [0], [0], [1], [0, 0, 1, 1], [], []>} : vector<2x32xbf16>, vector<32x128xbf16>, vector<2x128xf32> -> vector<2x128xf32>
    %151 = arith.addf %149, %150 : vector<2x128xf32>
    %152 = arith.negf %151 : vector<2x128xf32>
    %153 = math.exp %152 : vector<2x128xf32>
    %cst_32 = arith.constant 1.000000e+00 : f32
    %154 = vector.broadcast %cst_32 : f32 to vector<2x128xf32>
    %155 = arith.addf %154, %153 : vector<2x128xf32>
    %156 = arith.divf %154, %155 : vector<2x128xf32>
    %157 = math.tanh %151 : vector<2x128xf32>
    %158 = vector.extract_strided_slice %156 {offsets = [0, 0], sizes = [2, 32], strides = [1, 1]} : vector<2x128xf32> to vector<2x32xf32>
    %159 = vector.extract_strided_slice %156 {offsets = [0, 32], sizes = [2, 32], strides = [1, 1]} : vector<2x128xf32> to vector<2x32xf32>
    %160 = vector.extract_strided_slice %157 {offsets = [0, 64], sizes = [2, 32], strides = [1, 1]} : vector<2x128xf32> to vector<2x32xf32>
    %161 = vector.extract_strided_slice %156 {offsets = [0, 96], sizes = [2, 32], strides = [1, 1]} : vector<2x128xf32> to vector<2x32xf32>
    %162 = arith.mulf %159, %144 : vector<2x32xf32>
    %163 = arith.mulf %158, %160 : vector<2x32xf32>
    %164 = arith.addf %162, %163 : vector<2x32xf32>
    %165 = math.tanh %164 : vector<2x32xf32>
    %166 = arith.mulf %161, %165 : vector<2x32xf32>
    %167 = arith.truncf %166 : vector<2x32xf32> to vector<2x32xbf16>
    %c14 = arith.constant 14 : index
    %c0_33 = arith.constant 0 : index
    %168 = vector.load %arg11[%c14, %c0_33] : memref<16x32xbf16, #tpu.memory_space<vmem>>, vector<2x32xbf16>
    tpu.vector_store %arg11[%c14, %c0_33], %167 {strides = array<i32>} : memref<16x32xbf16, #tpu.memory_space<vmem>>, vector<2x32xbf16>,
    %c0_34 = arith.constant 0 : index
    %c0_35 = arith.constant 0 : index
    %169 = vector.load %arg11[%c0_34, %c0_35] : memref<16x32xbf16, #tpu.memory_space<vmem>>, vector<16x32xbf16>
    %c0_36 = arith.constant 0 : index
    %c0_37 = arith.constant 0 : index
    %170 = vector.load %arg4[%c0_36, %c0_37] : memref<32x64xbf16, #tpu.memory_space<vmem>>, vector<32x64xbf16>
    %cst_38 = arith.constant dense<0.000000e+00> : vector<16x64xf32>
    %171 = tpu.matmul %169, %170, %cst_38 {dimension_numbers = #tpu.dot_dimension_numbers<[1], [0], [0], [1], [0, 0, 1, 1], [], []>} : vector<16x32xbf16>, vector<32x64xbf16>, vector<16x64xf32> -> vector<16x64xf32>
    %c0_39 = arith.constant 0 : index
    %c0_40 = arith.constant 0 : index
    %172 = vector.load %arg5[%c0_39, %c0_40] : memref<1x64xf32, #tpu.memory_space<vmem>>, vector<1x64xf32>
    %173 = vector.broadcast %172 : vector<1x64xf32> to vector<16x64xf32>
    %174 = arith.addf %171, %173 : vector<16x64xf32>
    %cst_41 = arith.constant 0.000000e+00 : f32
    %175 = vector.broadcast %cst_41 : f32 to vector<16x64xf32>
    %176 = arith.maximumf %174, %175 : vector<16x64xf32>
    %177 = arith.truncf %176 : vector<16x64xf32> to vector<16x64xbf16>
    %c0_42 = arith.constant 0 : index
    %c0_43 = arith.constant 0 : index
    %178 = vector.load %arg6[%c0_42, %c0_43] : memref<64x32xbf16, #tpu.memory_space<vmem>>, vector<64x32xbf16>
    %cst_44 = arith.constant dense<0.000000e+00> : vector<16x32xf32>
    %179 = tpu.matmul %177, %178, %cst_44 {dimension_numbers = #tpu.dot_dimension_numbers<[1], [0], [0], [1], [0, 0, 1, 1], [], []>} : vector<16x64xbf16>, vector<64x32xbf16>, vector<16x32xf32> -> vector<16x32xf32>
    %c0_45 = arith.constant 0 : index
    %c0_46 = arith.constant 0 : index
    %180 = vector.load %arg7[%c0_45, %c0_46] : memref<1x32xf32, #tpu.memory_space<vmem>>, vector<1x32xf32>
    %181 = vector.broadcast %180 : vector<1x32xf32> to vector<16x32xf32>
    %182 = arith.addf %179, %181 : vector<16x32xf32>
    %cst_47 = arith.constant 0.000000e+00 : f32
    %183 = vector.broadcast %cst_47 : f32 to vector<16x32xf32>
    %184 = arith.maximumf %182, %183 : vector<16x32xf32>
    %185 = arith.truncf %184 : vector<16x32xf32> to vector<16x32xbf16>
    %c0_48 = arith.constant 0 : index
    %c0_49 = arith.constant 0 : index
    %186 = vector.load %arg8[%c0_48, %c0_49] : memref<32x8xbf16, #tpu.memory_space<vmem>>, vector<32x8xbf16>
    %cst_50 = arith.constant dense<0.000000e+00> : vector<16x8xf32>
    %187 = tpu.matmul %185, %186, %cst_50 {dimension_numbers = #tpu.dot_dimension_numbers<[1], [0], [0], [1], [0, 0, 1, 1], [], []>} : vector<16x32xbf16>, vector<32x8xbf16>, vector<16x8xf32> -> vector<16x8xf32>
    %c0_51 = arith.constant 0 : index
    %c0_52 = arith.constant 0 : index
    %188 = vector.load %arg9[%c0_51, %c0_52] : memref<1x8xf32, #tpu.memory_space<vmem>>, vector<1x8xf32>
    %189 = vector.broadcast %188 : vector<1x8xf32> to vector<16x8xf32>
    %190 = arith.addf %187, %189 : vector<16x8xf32>
    %c0_53 = arith.constant 0 : index
    %c0_54 = arith.constant 0 : index
    %191 = vector.load %arg10[%c0_53, %c0_54] : memref<16x8xf32, #tpu.memory_space<vmem>>, vector<16x8xf32>
    tpu.vector_store %arg10[%c0_53, %c0_54], %190 {strides = array<i32>} : memref<16x8xf32, #tpu.memory_space<vmem>>, vector<16x8xf32>,
    return
  }
}

</mosaic_0001>

<llo_original>
// kernel: lstm_model_forward.1
$region0: #{lstm_model_forward.1}
  #allocation0 [shape = 'u32[]', space=smem, size = 0x4, offset = 0x4, fixed_abs, tag = 'smem constant byte address 0x4 - core index']
  #allocation1 [shape = 'u32[72,128]{1,0:T(1,128)}', space=vmem, size = 0x9000, scoped, tag = 'internal scratch']
  #allocation2 [shape = 'bf16[16,32]{1,0:T(8,128)(2,1)}', space=vmem, size = 0x1000, scoped, tag = 'scratch operand']
  %s0 = inlined_call_operand.vmem [shape: bf16[16,16], index: 0, kind: input, shape index: {}]
  %s1 = inlined_call_operand.vmem [shape: bf16[16,128], index: 1, kind: input, shape index: {}]
  %s2 = inlined_call_operand.vmem [shape: bf16[32,128], index: 2, kind: input, shape index: {}]
  %s3 = inlined_call_operand.vmem [shape: f32[1,128], index: 3, kind: input, shape index: {}]
  %s4 = inlined_call_operand.vmem [shape: bf16[32,64], index: 4, kind: input, shape index: {}]
  %s5 = inlined_call_operand.vmem [shape: f32[1,64], index: 5, kind: input, shape index: {}]
  %s6 = inlined_call_operand.vmem [shape: bf16[64,32], index: 6, kind: input, shape index: {}]
  %s7 = inlined_call_operand.vmem [shape: f32[1,32], index: 7, kind: input, shape index: {}]
  %s8 = inlined_call_operand.vmem [shape: bf16[32,8], index: 8, kind: input, shape index: {}]
  %s9 = inlined_call_operand.vmem [shape: f32[1,8], index: 9, kind: input, shape index: {}]
  %s10 = inlined_call_operand.vmem [shape: f32[16,8], index: 10, kind: output, shape index: {}]
  %s11 = sld [smem:[#allocation0]]
  $region50: #{lstm_model_forward.1} parent=0
    _
  %s13 = ssub.s32 1, %s11
  %s14 = scalar_select 0, %s13, %s11
  // Predicated region
  $region2: #{lstm_model_forward.1} parent=0 // pred_check
    _
  $region3: #{lstm_model_forward.1} parent=0 // pred_check_branch
    %16 = sbr.rel (0) target = $region5
  $region4: #{lstm_model_forward.1} parent=0 // pred_region
    _
  $region5: #{lstm_model_forward.1} parent=0 // pred_fallthru
    _
  // Predicated region
  $region6: #{lstm_model_forward.1} parent=0 // pred_check
    _
  $region7: #{lstm_model_forward.1} parent=0 // pred_check_branch
    %18 = sbr.rel (0) target = $region9
  $region8: #{lstm_model_forward.1} parent=0 // pred_region
    _
  $region9: #{lstm_model_forward.1} parent=0 // pred_fallthru
    _
  // Predicated region
  $region10: #{lstm_model_forward.1} parent=0 // pred_check
    _
  $region11: #{lstm_model_forward.1} parent=0 // pred_check_branch
    %20 = sbr.rel (0) target = $region13
  $region12: #{lstm_model_forward.1} parent=0 // pred_region
    _
  $region13: #{lstm_model_forward.1} parent=0 // pred_fallthru
    _
  // Predicated region
  $region14: #{lstm_model_forward.1} parent=0 // pred_check
    _
  $region15: #{lstm_model_forward.1} parent=0 // pred_check_branch
    %22 = sbr.rel (0) target = $region17
  $region16: #{lstm_model_forward.1} parent=0 // pred_region
    _
  $region17: #{lstm_model_forward.1} parent=0 // pred_fallthru
    _
  // Predicated region
  $region18: #{lstm_model_forward.1} parent=0 // pred_check
    _
  $region19: #{lstm_model_forward.1} parent=0 // pred_check_branch
    %24 = sbr.rel (0) target = $region21
  $region20: #{lstm_model_forward.1} parent=0 // pred_region
    _
  $region21: #{lstm_model_forward.1} parent=0 // pred_fallthru
    _
  // Predicated region
  $region22: #{lstm_model_forward.1} parent=0 // pred_check
    _
  $region23: #{lstm_model_forward.1} parent=0 // pred_check_branch
    %26 = sbr.rel (0) target = $region25
  $region24: #{lstm_model_forward.1} parent=0 // pred_region
    _
  $region25: #{lstm_model_forward.1} parent=0 // pred_fallthru
    _
  // Predicated region
  $region26: #{lstm_model_forward.1} parent=0 // pred_check
    _
  $region27: #{lstm_model_forward.1} parent=0 // pred_check_branch
    %28 = sbr.rel (0) target = $region29
  $region28: #{lstm_model_forward.1} parent=0 // pred_region
    _
  $region29: #{lstm_model_forward.1} parent=0 // pred_fallthru
    _
  // Predicated region
  $region30: #{lstm_model_forward.1} parent=0 // pred_check
    _
  $region31: #{lstm_model_forward.1} parent=0 // pred_check_branch
    %30 = sbr.rel (0) target = $region33
  $region32: #{lstm_model_forward.1} parent=0 // pred_region
    _
  $region33: #{lstm_model_forward.1} parent=0 // pred_fallthru
    _
  // Predicated region
  $region34: #{lstm_model_forward.1} parent=0 // pred_check
    _
  $region35: #{lstm_model_forward.1} parent=0 // pred_check_branch
    %32 = sbr.rel (0) target = $region37
  $region36: #{lstm_model_forward.1} parent=0 // pred_region
    _
  $region37: #{lstm_model_forward.1} parent=0 // pred_fallthru
    _
  // Predicated region
  $region38: #{lstm_model_forward.1} parent=0 // pred_check
    _
  $region39: #{lstm_model_forward.1} parent=0 // pred_check_branch
    %34 = sbr.rel (0) target = $region41
  $region40: #{lstm_model_forward.1} parent=0 // pred_region
    _
  $region41: #{lstm_model_forward.1} parent=0 // pred_fallthru
    _
  %v36 = vld [vmem:[%s0] sm:$0xf]
  %v37 = vld [vmem:[%s0 + $0x4] sm:$0xf]
  %v38 = vld [vmem:[%s1] sm:$0xf]
  %v39 = vld [vmem:[%s1 + $0x4] sm:$0xf]
  %v40 = vld [vmem:[%s3] sm:$0x1]
  %v42 = vperm.slane %v40, 0
  %v46 = vunpack.c.l.b16 %v36
  %v47 = vunpack.c.l.b16 %v37
  %v48 = vpack.c.b16 %v47, %v46
  %v51 = vunpack.c.l.b16 %v38
  %v52 = vunpack.c.l.b16 %v39
  %v53 = vpack.c.b16 %v52, %v51
  %vm55 = vcmask 130048
  %v57 = vsel %vm55, %v48, 0
  %59 = vmatpush.bf16.msra.mxu0 0
  %60 = vmatpush.bf16.msra.mxu0 0
  %61 = vmatpush.bf16.msra.mxu0 0
  %62 = vmatpush.bf16.msra.mxu0 0
  %63 = vmatpush.bf16.msra.mxu0 0
  %64 = vmatpush.bf16.msra.mxu0 0
  %65 = vmatpush.bf16.msra.mxu0 0
  %66 = vmatpush.bf16.msra.mxu0 %v53
  %67 = vmatmul.bf16.gmra.mxu0 %v57
  %v68 = vpop.f32.mrf.mxu0
  %v69 = vadd.f32 %v42, %v68
  %v70 = vpop.f32.mrf.mxu0
  %v71 = vadd.f32 %v42, %v70
  %72 = vdwg.mxu0
  %v73 = vld [vmem:[%s2] sm:$0xf]
  %v74 = vld [vmem:[%s2 + $0x4] sm:$0xf]
  %v75 = vld [vmem:[%s2 + $0x8] sm:$0xf]
  %v76 = vld [vmem:[%s2 + $0xc] sm:$0xf]
  %v81 = vunpack.c.l.b16 %v73
  %v82 = vunpack.c.l.b16 %v74
  %v83 = vunpack.c.l.b16 %v75
  %v84 = vunpack.c.l.b16 %v76
  %v85 = vpack.c.b16 %v82, %v81
  %v86 = vpack.c.b16 %v84, %v83
  %vm89 = vcmask 261120
  %v91 = vsel %vm89, 0, 0
  %93 = vmatpush.bf16.msra.mxu0 0
  %94 = vmatpush.bf16.msra.mxu0 0
  %95 = vmatpush.bf16.msra.mxu0 0
  %96 = vmatpush.bf16.msra.mxu0 0
  %97 = vmatpush.bf16.msra.mxu0 0
  %98 = vmatpush.bf16.msra.mxu0 0
  %99 = vmatpush.bf16.msra.mxu0 %v86
  %100 = vmatpush.bf16.msra.mxu0 %v85
  %101 = vmatmul.bf16.gmra.mxu0 %v91
  %v102 = vpop.f32.mrf.mxu0
  %v103 = vadd.f32 0.0, %v102
  %v104 = vpop.f32.mrf.mxu0
  %105 = vdwg.mxu0
  %v106 = vadd.f32 %v69, %v103
  %v107 = vxor.u32 %v106, 2147483648
  %v108 = vmul.f32 %v107, 1.442695
  %v109 = vpow.pop %v108
  %v110 = vadd.f32 %v109, 1.0
  %v111 = vrcp.pop %v110
  %v112 = vmul.f32 %v110, %v111
  %v113 = vsub.f32 1.0, %v112
  %v114 = vmul.f32 %v111, %v113
  %v115 = vadd.f32 %v111, %v114
  %vm116 = vweird.f32 %v110
  %vm117 = vweird.f32 %v111
  %vm118 = vmor %vm116, %vm117
  %v119 = vsel %vm118, %v111, %v115
  %v120 = vand.u32 2147483647, %v110
  %vm121 = vcmp.eq.f32.partialorder %v120, 8.507059e+37
  %v122 = vand.u32 %v110, 2147483648
  %v123 = vor.u32 1.1754944e-38, %v122
  %v124 = vsel %vm121, %v123, %v119
  %v125 = vmul.f32 1.0, %v124
  %v126 = vtanh.pop %v106
  %v127 = vmul.f32 %v125, 0.0
  %129 = vrot.lane.b32.xlu0 %v126, 64
  %v130 = vpop.permute.xlu0 %129
  %v132 = vmul.f32 %v125, %v130
  %134 = vrot.lane.b32.xlu0 %v132, 32
  %v135 = vpop.permute.xlu0 %134
  %v137 = vadd.f32 %v127, %v135
  %v138 = vtanh.pop %v137
  %140 = vrot.lane.b32.xlu0 %v138, 64
  %v141 = vpop.permute.xlu0 %140
  %v143 = vmul.f32 %v125, %v141
  %v144 = vpack.c.bf16 %v143, %v143
  %146 = vrot.lane.b32.xlu0 %v144, 32
  %v147 = vpop.permute.xlu0 %146
  %vm149 = vcmask 253952
  %150 = vst.msk [vmem:[#allocation2] sm:$0x1] %vm149, %v147
  %v151 = vunpack.c.l.b16 %v144
  %v152 = vpack.c.b16 %v151, %v151
  %153 = vrot.lane.b32.xlu0 %v152, 32
  %v154 = vpop.permute.xlu0 %153
  %v156 = vsel %vm89, %v154, 0
  %158 = vmatpush.bf16.msra.mxu0 0
  %159 = vmatpush.bf16.msra.mxu0 0
  %160 = vmatpush.bf16.msra.mxu0 0
  %161 = vmatpush.bf16.msra.mxu0 0
  %162 = vmatpush.bf16.msra.mxu0 0
  %163 = vmatpush.bf16.msra.mxu0 0
  %164 = vmatpush.bf16.msra.mxu0 %v86
  %165 = vmatpush.bf16.msra.mxu0 %v85
  %166 = vmatmul.bf16.gmra.mxu0 %v156
  %v167 = vpop.f32.mrf.mxu0
  %v168 = vadd.f32 0.0, %v167
  %v169 = vpop.f32.mrf.mxu0
  %170 = vdwg.mxu0
  %v172 = vrot.slane %v168, 6
  %v174 = vadd.f32 %v69, %v172
  %v175 = vxor.u32 %v174, 2147483648
  %v176 = vmul.f32 %v175, 1.442695
  %v177 = vpow.pop %v176
  %v178 = vadd.f32 %v177, 1.0
  %v179 = vrcp.pop %v178
  %v180 = vmul.f32 %v178, %v179
  %v181 = vsub.f32 1.0, %v180
  %v182 = vmul.f32 %v179, %v181
  %v183 = vadd.f32 %v179, %v182
  %vm184 = vweird.f32 %v178
  %vm185 = vweird.f32 %v179
  %vm186 = vmor %vm184, %vm185
  %v187 = vsel %vm186, %v179, %v183
  %v188 = vand.u32 2147483647, %v178
  %vm189 = vcmp.eq.f32.partialorder %v188, 8.507059e+37
  %v190 = vand.u32 %v178, 2147483648
  %v191 = vor.u32 1.1754944e-38, %v190
  %v192 = vsel %vm189, %v191, %v187
  %v193 = vmul.f32 1.0, %v192
  %v194 = vtanh.pop %v174
  %v196 = vrot.slane %v137, 6
  %v198 = vmul.f32 %v193, %v196
  %200 = vrot.lane.b32.xlu0 %v194, 64
  %v201 = vpop.permute.xlu0 %200
  %v203 = vmul.f32 %v193, %v201
  %205 = vrot.lane.b32.xlu0 %v203, 32
  %v206 = vpop.permute.xlu0 %205
  %v208 = vadd.f32 %v198, %v206
  %v209 = vtanh.pop %v208
  %211 = vrot.lane.b32.xlu0 %v209, 64
  %v212 = vpop.permute.xlu0 %211
  %v214 = vmul.f32 %v193, %v212
  %v215 = vpack.c.bf16 %v214, %v214
  %217 = vrot.lane.b32.xlu0 %v215, 32
  %v218 = vpop.permute.xlu0 %217
  %vm220 = vcmask 254977
  %221 = vst.msk [vmem:[#allocation2] sm:$0x2] %vm220, %v218
  %v222 = vunpack.c.l.b16 %v215
  %v223 = vpack.c.b16 %v222, %v222
  %v224 = vrot.slane %v223, 1
  %225 = vrot.lane.b32.xlu0 %v224, 32
  %v226 = vpop.permute.xlu0 %225
  %v228 = vsel %vm89, %v226, 0
  %230 = vmatpush.bf16.msra.mxu0 0
  %231 = vmatpush.bf16.msra.mxu0 0
  %232 = vmatpush.bf16.msra.mxu0 0
  %233 = vmatpush.bf16.msra.mxu0 0
  %234 = vmatpush.bf16.msra.mxu0 0
  %235 = vmatpush.bf16.msra.mxu0 0
  %236 = vmatpush.bf16.msra.mxu0 %v86
  %237 = vmatpush.bf16.msra.mxu0 %v85
  %238 = vmatmul.bf16.gmra.mxu0 %v228
  %v239 = vpop.f32.mrf.mxu0
  %v240 = vadd.f32 0.0, %v239
  %v241 = vpop.f32.mrf.mxu0
  %242 = vdwg.mxu0
  %v244 = vrot.slane %v240, 4
  %v246 = vadd.f32 %v69, %v244
  %v247 = vxor.u32 %v246, 2147483648
  %v248 = vmul.f32 %v247, 1.442695
  %v249 = vpow.pop %v248
  %v250 = vadd.f32 %v249, 1.0
  %v251 = vrcp.pop %v250
  %v252 = vmul.f32 %v250, %v251
  %v253 = vsub.f32 1.0, %v252
  %v254 = vmul.f32 %v251, %v253
  %v255 = vadd.f32 %v251, %v254
  %vm256 = vweird.f32 %v250
  %vm257 = vweird.f32 %v251
  %vm258 = vmor %vm256, %vm257
  %v259 = vsel %vm258, %v251, %v255
  %v260 = vand.u32 2147483647, %v250
  %vm261 = vcmp.eq.f32.partialorder %v260, 8.507059e+37
  %v262 = vand.u32 %v250, 2147483648
  %v263 = vor.u32 1.1754944e-38, %v262
  %v264 = vsel %vm261, %v263, %v259
  %v265 = vmul.f32 1.0, %v264
  %v266 = vtanh.pop %v246
  %v268 = vrot.slane %v208, 6
  %v270 = vmul.f32 %v265, %v268
  %272 = vrot.lane.b32.xlu0 %v266, 64
  %v273 = vpop.permute.xlu0 %272
  %v275 = vmul.f32 %v265, %v273
  %277 = vrot.lane.b32.xlu0 %v275, 32
  %v278 = vpop.permute.xlu0 %277
  %v280 = vadd.f32 %v270, %v278
  %v281 = vtanh.pop %v280
  %283 = vrot.lane.b32.xlu0 %v281, 64
  %v284 = vpop.permute.xlu0 %283
  %v286 = vmul.f32 %v265, %v284
  %v287 = vpack.c.bf16 %v286, %v286
  %289 = vrot.lane.b32.xlu0 %v287, 32
  %v290 = vpop.permute.xlu0 %289
  %vm292 = vcmask 256002
  %293 = vst.msk [vmem:[#allocation2] sm:$0x4] %vm292, %v290
  %v294 = vunpack.c.l.b16 %v287
  %v295 = vpack.c.b16 %v294, %v294
  %v296 = vrot.slane %v295, 2
  %297 = vrot.lane.b32.xlu0 %v296, 32
  %v298 = vpop.permute.xlu0 %297
  %v300 = vsel %vm89, %v298, 0
  %302 = vmatpush.bf16.msra.mxu0 0
  %303 = vmatpush.bf16.msra.mxu0 0
  %304 = vmatpush.bf16.msra.mxu0 0
  %305 = vmatpush.bf16.msra.mxu0 0
  %306 = vmatpush.bf16.msra.mxu0 0
  %307 = vmatpush.bf16.msra.mxu0 0
  %308 = vmatpush.bf16.msra.mxu0 %v86
  %309 = vmatpush.bf16.msra.mxu0 %v85
  %310 = vmatmul.bf16.gmra.mxu0 %v300
  %v311 = vpop.f32.mrf.mxu0
  %v312 = vadd.f32 0.0, %v311
  %v313 = vpop.f32.mrf.mxu0
  %314 = vdwg.mxu0
  %v316 = vrot.slane %v312, 2
  %v318 = vadd.f32 %v69, %v316
  %v319 = vxor.u32 %v318, 2147483648
  %v320 = vmul.f32 %v319, 1.442695
  %v321 = vpow.pop %v320
  %v322 = vadd.f32 %v321, 1.0
  %v323 = vrcp.pop %v322
  %v324 = vmul.f32 %v322, %v323
  %v325 = vsub.f32 1.0, %v324
  %v326 = vmul.f32 %v323, %v325
  %v327 = vadd.f32 %v323, %v326
  %vm328 = vweird.f32 %v322
  %vm329 = vweird.f32 %v323
  %vm330 = vmor %vm328, %vm329
  %v331 = vsel %vm330, %v323, %v327
  %v332 = vand.u32 2147483647, %v322
  %vm333 = vcmp.eq.f32.partialorder %v332, 8.507059e+37
  %v334 = vand.u32 %v322, 2147483648
  %v335 = vor.u32 1.1754944e-38, %v334
  %v336 = vsel %vm333, %v335, %v331
  %v337 = vmul.f32 1.0, %v336
  %v338 = vtanh.pop %v318
  %v340 = vrot.slane %v280, 6
  %v342 = vmul.f32 %v337, %v340
  %344 = vrot.lane.b32.xlu0 %v338, 64
  %v345 = vpop.permute.xlu0 %344
  %v347 = vmul.f32 %v337, %v345
  %349 = vrot.lane.b32.xlu0 %v347, 32
  %v350 = vpop.permute.xlu0 %349
  %v352 = vadd.f32 %v342, %v350
  %v353 = vtanh.pop %v352
  %355 = vrot.lane.b32.xlu0 %v353, 64
  %v356 = vpop.permute.xlu0 %355
  %v358 = vmul.f32 %v337, %v356
  %v359 = vpack.c.bf16 %v358, %v358
  %361 = vrot.lane.b32.xlu0 %v359, 32
  %v362 = vpop.permute.xlu0 %361
  %vm364 = vcmask 257027
  %365 = vst.msk [vmem:[#allocation2] sm:$0x8] %vm364, %v362
  %v366 = vunpack.c.l.b16 %v359
  %v367 = vpack.c.b16 %v366, %v366
  %v368 = vrot.slane %v367, 3
  %369 = vrot.lane.b32.xlu0 %v368, 32
  %v370 = vpop.permute.xlu0 %369
  %v372 = vsel %vm89, %v370, 0
  %374 = vmatpush.bf16.msra.mxu0 0
  %375 = vmatpush.bf16.msra.mxu0 0
  %376 = vmatpush.bf16.msra.mxu0 0
  %377 = vmatpush.bf16.msra.mxu0 0
  %378 = vmatpush.bf16.msra.mxu0 0
  %379 = vmatpush.bf16.msra.mxu0 0
  %380 = vmatpush.bf16.msra.mxu0 %v86
  %381 = vmatpush.bf16.msra.mxu0 %v85
  %382 = vmatmul.bf16.gmra.mxu0 %v372
  %v383 = vpop.f32.mrf.mxu0
  %v384 = vadd.f32 0.0, %v383
  %v385 = vpop.f32.mrf.mxu0
  %386 = vdwg.mxu0
  %v387 = vadd.f32 %v71, %v384
  %v388 = vxor.u32 %v387, 2147483648
  %v389 = vmul.f32 %v388, 1.442695
  %v390 = vpow.pop %v389
  %v391 = vadd.f32 %v390, 1.0
  %v392 = vrcp.pop %v391
  %v393 = vmul.f32 %v391, %v392
  %v394 = vsub.f32 1.0, %v393
  %v395 = vmul.f32 %v392, %v394
  %v396 = vadd.f32 %v392, %v395
  %vm397 = vweird.f32 %v391
  %vm398 = vweird.f32 %v392
  %vm399 = vmor %vm397, %vm398
  %v400 = vsel %vm399, %v392, %v396
  %v401 = vand.u32 2147483647, %v391
  %vm402 = vcmp.eq.f32.partialorder %v401, 8.507059e+37
  %v403 = vand.u32 %v391, 2147483648
  %v404 = vor.u32 1.1754944e-38, %v403
  %v405 = vsel %vm402, %v404, %v400
  %v406 = vmul.f32 1.0, %v405
  %v407 = vtanh.pop %v387
  %v409 = vrot.slane %v352, 6
  %v411 = vmul.f32 %v406, %v409
  %413 = vrot.lane.b32.xlu0 %v407, 64
  %v414 = vpop.permute.xlu0 %413
  %v416 = vmul.f32 %v406, %v414
  %418 = vrot.lane.b32.xlu0 %v416, 32
  %v419 = vpop.permute.xlu0 %418
  %v421 = vadd.f32 %v411, %v419
  %v422 = vtanh.pop %v421
  %424 = vrot.lane.b32.xlu0 %v422, 64
  %v425 = vpop.permute.xlu0 %424
  %v427 = vmul.f32 %v406, %v425
  %v428 = vpack.c.bf16 %v427, %v427
  %430 = vrot.lane.b32.xlu0 %v428, 32
  %v431 = vpop.permute.xlu0 %430
  %433 = vst.msk [vmem:[#allocation2 + $0x4] sm:$0x1] %vm149, %v431
  %v434 = vunpack.c.l.b16 %v428
  %v435 = vpack.c.b16 %v434, %v434
  %436 = vrot.lane.b32.xlu0 %v435, 32
  %v437 = vpop.permute.xlu0 %436
  %v439 = vsel %vm89, %v437, 0
  %441 = vmatpush.bf16.msra.mxu0 0
  %442 = vmatpush.bf16.msra.mxu0 0
  %443 = vmatpush.bf16.msra.mxu0 0
  %444 = vmatpush.bf16.msra.mxu0 0
  %445 = vmatpush.bf16.msra.mxu0 0
  %446 = vmatpush.bf16.msra.mxu0 0
  %447 = vmatpush.bf16.msra.mxu0 %v86
  %448 = vmatpush.bf16.msra.mxu0 %v85
  %449 = vmatmul.bf16.gmra.mxu0 %v439
  %v450 = vpop.f32.mrf.mxu0
  %v451 = vadd.f32 0.0, %v450
  %v452 = vpop.f32.mrf.mxu0
  %453 = vdwg.mxu0
  %v455 = vrot.slane %v451, 6
  %v457 = vadd.f32 %v71, %v455
  %v458 = vxor.u32 %v457, 2147483648
  %v459 = vmul.f32 %v458, 1.442695
  %v460 = vpow.pop %v459
  %v461 = vadd.f32 %v460, 1.0
  %v462 = vrcp.pop %v461
  %v463 = vmul.f32 %v461, %v462
  %v464 = vsub.f32 1.0, %v463
  %v465 = vmul.f32 %v462, %v464
  %v466 = vadd.f32 %v462, %v465
  %vm467 = vweird.f32 %v461
  %vm468 = vweird.f32 %v462
  %vm469 = vmor %vm467, %vm468
  %v470 = vsel %vm469, %v462, %v466
  %v471 = vand.u32 2147483647, %v461
  %vm472 = vcmp.eq.f32.partialorder %v471, 8.507059e+37
  %v473 = vand.u32 %v461, 2147483648
  %v474 = vor.u32 1.1754944e-38, %v473
  %v475 = vsel %vm472, %v474, %v470
  %v476 = vmul.f32 1.0, %v475
  %v477 = vtanh.pop %v457
  %v479 = vrot.slane %v421, 6
  %v481 = vmul.f32 %v476, %v479
  %483 = vrot.lane.b32.xlu0 %v477, 64
  %v484 = vpop.permute.xlu0 %483
  %v486 = vmul.f32 %v476, %v484
  %488 = vrot.lane.b32.xlu0 %v486, 32
  %v489 = vpop.permute.xlu0 %488
  %v491 = vadd.f32 %v481, %v489
  %v492 = vtanh.pop %v491
  %494 = vrot.lane.b32.xlu0 %v492, 64
  %v495 = vpop.permute.xlu0 %494
  %v497 = vmul.f32 %v476, %v495
  %v498 = vpack.c.bf16 %v497, %v497
  %500 = vrot.lane.b32.xlu0 %v498, 32
  %v501 = vpop.permute.xlu0 %500
  %503 = vst.msk [vmem:[#allocation2 + $0x4] sm:$0x2] %vm220, %v501
  %v504 = vunpack.c.l.b16 %v498
  %v505 = vpack.c.b16 %v504, %v504
  %v506 = vrot.slane %v505, 1
  %507 = vrot.lane.b32.xlu0 %v506, 32
  %v508 = vpop.permute.xlu0 %507
  %v510 = vsel %vm89, %v508, 0
  %512 = vmatpush.bf16.msra.mxu0 0
  %513 = vmatpush.bf16.msra.mxu0 0
  %514 = vmatpush.bf16.msra.mxu0 0
  %515 = vmatpush.bf16.msra.mxu0 0
  %516 = vmatpush.bf16.msra.mxu0 0
  %517 = vmatpush.bf16.msra.mxu0 0
  %518 = vmatpush.bf16.msra.mxu0 %v86
  %519 = vmatpush.bf16.msra.mxu0 %v85
  %520 = vmatmul.bf16.gmra.mxu0 %v510
  %v521 = vpop.f32.mrf.mxu0
  %v522 = vadd.f32 0.0, %v521
  %v523 = vpop.f32.mrf.mxu0
  %524 = vdwg.mxu0
  %v526 = vrot.slane %v522, 4
  %v528 = vadd.f32 %v71, %v526
  %v529 = vxor.u32 %v528, 2147483648
  %v530 = vmul.f32 %v529, 1.442695
  %v531 = vpow.pop %v530
  %v532 = vadd.f32 %v531, 1.0
  %v533 = vrcp.pop %v532
  %v534 = vmul.f32 %v532, %v533
  %v535 = vsub.f32 1.0, %v534
  %v536 = vmul.f32 %v533, %v535
  %v537 = vadd.f32 %v533, %v536
  %vm538 = vweird.f32 %v532
  %vm539 = vweird.f32 %v533
  %vm540 = vmor %vm538, %vm539
  %v541 = vsel %vm540, %v533, %v537
  %v542 = vand.u32 2147483647, %v532
  %vm543 = vcmp.eq.f32.partialorder %v542, 8.507059e+37
  %v544 = vand.u32 %v532, 2147483648
  %v545 = vor.u32 1.1754944e-38, %v544
  %v546 = vsel %vm543, %v545, %v541
  %v547 = vmul.f32 1.0, %v546
  %v548 = vtanh.pop %v528
  %v550 = vrot.slane %v491, 6
  %v552 = vmul.f32 %v547, %v550
  %554 = vrot.lane.b32.xlu0 %v548, 64
  %v555 = vpop.permute.xlu0 %554
  %v557 = vmul.f32 %v547, %v555
  %559 = vrot.lane.b32.xlu0 %v557, 32
  %v560 = vpop.permute.xlu0 %559
  %v562 = vadd.f32 %v552, %v560
  %v563 = vtanh.pop %v562
  %565 = vrot.lane.b32.xlu0 %v563, 64
  %v566 = vpop.permute.xlu0 %565
  %v568 = vmul.f32 %v547, %v566
  %v569 = vpack.c.bf16 %v568, %v568
  %571 = vrot.lane.b32.xlu0 %v569, 32
  %v572 = vpop.permute.xlu0 %571
  %574 = vst.msk [vmem:[#allocation2 + $0x4] sm:$0x4] %vm292, %v572
  %v575 = vunpack.c.l.b16 %v569
  %v576 = vpack.c.b16 %v575, %v575
  %v577 = vrot.slane %v576, 2
  %578 = vrot.lane.b32.xlu0 %v577, 32
  %v579 = vpop.permute.xlu0 %578
  %v581 = vsel %vm89, %v579, 0
  %583 = vmatpush.bf16.msra.mxu0 0
  %584 = vmatpush.bf16.msra.mxu0 0
  %585 = vmatpush.bf16.msra.mxu0 0
  %586 = vmatpush.bf16.msra.mxu0 0
  %587 = vmatpush.bf16.msra.mxu0 0
  %588 = vmatpush.bf16.msra.mxu0 0
  %589 = vmatpush.bf16.msra.mxu0 %v86
  %590 = vmatpush.bf16.msra.mxu0 %v85
  %591 = vmatmul.bf16.gmra.mxu0 %v581
  %v592 = vpop.f32.mrf.mxu0
  %v593 = vadd.f32 0.0, %v592
  %v594 = vpop.f32.mrf.mxu0
  %595 = vdwg.mxu0
  %v597 = vrot.slane %v593, 2
  %v599 = vadd.f32 %v71, %v597
  %v600 = vxor.u32 %v599, 2147483648
  %v601 = vmul.f32 %v600, 1.442695
  %v602 = vpow.pop %v601
  %v603 = vadd.f32 %v602, 1.0
  %v604 = vrcp.pop %v603
  %v605 = vmul.f32 %v603, %v604
  %v606 = vsub.f32 1.0, %v605
  %v607 = vmul.f32 %v604, %v606
  %v608 = vadd.f32 %v604, %v607
  %vm609 = vweird.f32 %v603
  %vm610 = vweird.f32 %v604
  %vm611 = vmor %vm609, %vm610
  %v612 = vsel %vm611, %v604, %v608
  %v613 = vand.u32 2147483647, %v603
  %vm614 = vcmp.eq.f32.partialorder %v613, 8.507059e+37
  %v615 = vand.u32 %v603, 2147483648
  %v616 = vor.u32 1.1754944e-38, %v615
  %v617 = vsel %vm614, %v616, %v612
  %v618 = vmul.f32 1.0, %v617
  %v619 = vtanh.pop %v599
  %v621 = vrot.slane %v562, 6
  %v623 = vmul.f32 %v618, %v621
  %625 = vrot.lane.b32.xlu0 %v619, 64
  %v626 = vpop.permute.xlu0 %625
  %v628 = vmul.f32 %v618, %v626
  %630 = vrot.lane.b32.xlu0 %v628, 32
  %v631 = vpop.permute.xlu0 %630
  %v633 = vadd.f32 %v623, %v631
  %v634 = vtanh.pop %v633
  %636 = vrot.lane.b32.xlu0 %v634, 64
  %v637 = vpop.permute.xlu0 %636
  %v639 = vmul.f32 %v618, %v637
  %v640 = vpack.c.bf16 %v639, %v639
  %642 = vrot.lane.b32.xlu0 %v640, 32
  %v643 = vpop.permute.xlu0 %642
  %645 = vst.msk [vmem:[#allocation2 + $0x4] sm:$0x8] %vm364, %v643
  %v646 = vld [vmem:[#allocation2] sm:$0xf]
  %v647 = vld [vmem:[#allocation2 + $0x4] sm:$0xf]
  %v648 = vld [vmem:[%s4] sm:$0xf]
  %v649 = vld [vmem:[%s4 + $0x4] sm:$0xf]
  %v650 = vld [vmem:[%s4 + $0x8] sm:$0xf]
  %v651 = vld [vmem:[%s4 + $0xc] sm:$0xf]
  %v652 = vld [vmem:[%s5] sm:$0x1]
  %v654 = vperm.slane %v652, 0
  %v658 = vunpack.c.l.b16 %v646
  %v659 = vunpack.c.l.b16 %v647
  %v660 = vpack.c.b16 %v659, %v658
  %v665 = vunpack.c.l.b16 %v648
  %v666 = vunpack.c.l.b16 %v649
  %v667 = vunpack.c.l.b16 %v650
  %v668 = vunpack.c.l.b16 %v651
  %v669 = vpack.c.b16 %v666, %v665
  %v670 = vpack.c.b16 %v668, %v667
  %v674 = vsel %vm89, %v660, 0
  %676 = vmatpush.bf16.msra.mxu0 0
  %677 = vmatpush.bf16.msra.mxu0 0
  %678 = vmatpush.bf16.msra.mxu0 0
  %679 = vmatpush.bf16.msra.mxu0 0
  %680 = vmatpush.bf16.msra.mxu0 0
  %681 = vmatpush.bf16.msra.mxu0 0
  %682 = vmatpush.bf16.msra.mxu0 %v670
  %683 = vmatpush.bf16.msra.mxu0 %v669
  %684 = vmatmul.bf16.gmra.mxu0 %v674
  %v685 = vpop.f32.mrf.mxu0
  %v686 = vadd.f32 %v654, %v685
  %v687 = vpop.f32.mrf.mxu0
  %v688 = vadd.f32 %v654, %v687
  %689 = vdwg.mxu0
  %v690 = vmax.f32 %v686, 0.0
  %v691 = vmax.f32 %v688, 0.0
  %v692 = vpack.c.bf16 %v691, %v690
  %v693 = vld [vmem:[%s6] sm:$0xf]
  %v694 = vld [vmem:[%s6 + $0x4] sm:$0xf]
  %v695 = vld [vmem:[%s6 + $0x8] sm:$0xf]
  %v696 = vld [vmem:[%s6 + $0xc] sm:$0xf]
  %v697 = vld [vmem:[%s6 + $0x10] sm:$0xf]
  %v698 = vld [vmem:[%s6 + $0x14] sm:$0xf]
  %v699 = vld [vmem:[%s6 + $0x18] sm:$0xf]
  %v700 = vld [vmem:[%s6 + $0x1c] sm:$0xf]
  %v701 = vld [vmem:[%s7] sm:$0x1]
  %v703 = vperm.slane %v701, 0
  %v713 = vunpack.c.l.b16 %v693
  %v714 = vunpack.c.l.b16 %v694
  %v715 = vunpack.c.l.b16 %v695
  %v716 = vunpack.c.l.b16 %v696
  %v717 = vunpack.c.l.b16 %v697
  %v718 = vunpack.c.l.b16 %v698
  %v719 = vunpack.c.l.b16 %v699
  %v720 = vunpack.c.l.b16 %v700
  %v721 = vpack.c.b16 %v714, %v713
  %v722 = vpack.c.b16 %v716, %v715
  %v723 = vpack.c.b16 %v718, %v717
  %v724 = vpack.c.b16 %v720, %v719
  %vm729 = vcmask 523264
  %v731 = vsel %vm729, %v692, 0
  %733 = vmatpush.bf16.msra.mxu0 0
  %734 = vmatpush.bf16.msra.mxu0 0
  %735 = vmatpush.bf16.msra.mxu0 0
  %736 = vmatpush.bf16.msra.mxu0 0
  %737 = vmatpush.bf16.msra.mxu0 %v724
  %738 = vmatpush.bf16.msra.mxu0 %v723
  %739 = vmatpush.bf16.msra.mxu0 %v722
  %740 = vmatpush.bf16.msra.mxu0 %v721
  %741 = vmatmul.bf16.gmra.mxu0 %v731
  %v742 = vpop.f32.mrf.mxu0
  %v743 = vadd.f32 %v703, %v742
  %v744 = vpop.f32.mrf.mxu0
  %v745 = vadd.f32 %v703, %v744
  %746 = vdwg.mxu0
  %v747 = vmax.f32 %v743, 0.0
  %v748 = vmax.f32 %v745, 0.0
  %v749 = vpack.c.bf16 %v748, %v747
  %v750 = vld [vmem:[%s8] sm:$0xf]
  %v751 = vld [vmem:[%s8 + $0x4] sm:$0xf]
  %v752 = vld [vmem:[%s8 + $0x8] sm:$0xf]
  %v753 = vld [vmem:[%s8 + $0xc] sm:$0xf]
  %v754 = vld [vmem:[%s9] sm:$0x1]
  %v756 = vperm.slane %v754, 0
  %v762 = vunpack.c.l.b16 %v750
  %v763 = vunpack.c.l.b16 %v751
  %v764 = vunpack.c.l.b16 %v752
  %v765 = vunpack.c.l.b16 %v753
  %v766 = vpack.c.b16 %v763, %v762
  %v767 = vpack.c.b16 %v765, %v764
  %v771 = vsel %vm89, %v749, 0
  %773 = vmatpush.bf16.msra.mxu0 0
  %774 = vmatpush.bf16.msra.mxu0 0
  %775 = vmatpush.bf16.msra.mxu0 0
  %776 = vmatpush.bf16.msra.mxu0 0
  %777 = vmatpush.bf16.msra.mxu0 0
  %778 = vmatpush.bf16.msra.mxu0 0
  %779 = vmatpush.bf16.msra.mxu0 %v767
  %780 = vmatpush.bf16.msra.mxu0 %v766
  %781 = vmatmul.bf16.gmra.mxu0 %v771
  %v782 = vpop.f32.mrf.mxu0
  %v783 = vadd.f32 %v756, %v782
  %v784 = vpop.f32.mrf.mxu0
  %v785 = vadd.f32 %v756, %v784
  %786 = vdwg.mxu0
  %vm787 = vcmask 64512
  %788 = vst.msk [vmem:[%s10] sm:$0xff] %vm787, %v783
  %789 = vst.msk [vmem:[%s10 + $0x8] sm:$0xff] %vm787, %v785
  // Predicated region
  $region42: #{lstm_model_forward.1} parent=0 // pred_check
    _
  $region43: #{lstm_model_forward.1} parent=0 // pred_check_branch
    %791 = sbr.rel (0) target = $region45
  $region44: #{lstm_model_forward.1} parent=0 // pred_region
    _
  $region45: #{lstm_model_forward.1} parent=0 // pred_fallthru
    _
  // Predicated region
  $region46: #{lstm_model_forward.1} parent=0 // pred_check
    _
  $region47: #{lstm_model_forward.1} parent=0 // pred_check_branch
    %793 = sbr.rel (0) target = $region49
  $region48: #{lstm_model_forward.1} parent=0 // pred_region
    _
  $region49: #{lstm_model_forward.1} parent=0 // pred_fallthru
    _

</llo_original>
